<compile_context>
chip_gen: v7x
topology: tpu7x:2x2x1
jax: 0.10.0
libtpu: 0.0.40
codegen_flags: <defaults>
</compile_context>

<pallas_src>
import functools

import jax
import jax.numpy as jnp
from jax.experimental import pallas as pl
from jax.experimental.pallas import tpu as pltpu

FEAT = 67      # 16 + 1 + 1 + 1 + 16 + 16 + 16
HIDDEN = 73    # 16 + 1 + 16 + 16 + 16 + 8
DOOR_COL = 18  # column index of door_state inside elev_info


def pretrain4_kernel(x_ref, w_ref, tbl_ref, o_ref):
    x = x_ref[...]                         # [TB, 67] f32
    w = w_ref[...]                         # [1, 67]  f32 (broadcasts over rows)

    # Affine part: single VPU multiply + single lane (XLU) reduction.
    acc = jnp.sum(x * w, axis=1)           # [TB]

    # Door embedding folded into a 4-entry bias table (Linear bias included);
    # 4-way select on the integer-valued door_state column (values in 0..3,
    # guaranteed by the original Embedding(4, 8); d >= 3 clamps to entry 3).
    d = x[:, DOOR_COL].astype(jnp.int32)   # [TB]
    t0 = tbl_ref[0]
    t1 = tbl_ref[1]
    t2 = tbl_ref[2]
    t3 = tbl_ref[3]
    door = jnp.where(d == 0, t0,
           jnp.where(d == 1, t1,
           jnp.where(d == 2, t2, t3)))     # [TB]

    # Lane-dense store of the whole (1, TB) block (no masked vst).
    o_ref[...] = (acc + door)[None, :]


@functools.partial(jax.jit, static_argnames=("tb",))
def pretrain_model4(x, door_emb, w, b, *, tb=512):
    """x: [B, 67] f32, door_emb: [4, 8] f32, w: [1, 73] f32, b: [1] f32 -> [B, 1]."""
    B = x.shape[0]
    x = x.astype(jnp.float32)
    w_row = jnp.asarray(w, jnp.float32).reshape(HIDDEN)      # [73]
    bias = jnp.asarray(b, jnp.float32).reshape(())           # scalar

    # Scatter Linear weights back onto their input columns
    # (vol @16 and door_state @18 get zero weight; door handled via table).
    w_eff = jnp.zeros((FEAT,), jnp.float32)
    w_eff = w_eff.at[0:16].set(w_row[0:16])       # pos_vec
    w_eff = w_eff.at[17].set(w_row[16])           # dir
    w_eff = w_eff.at[19:35].set(w_row[17:33])     # car_call
    w_eff = w_eff.at[35:51].set(w_row[33:49])     # up_call
    w_eff = w_eff.at[51:67].set(w_row[49:65])     # dn_call
    w_eff = w_eff.reshape(1, FEAT)

    # Embedding(4, 8) folded with its Linear slice and the bias -> [4] table.
    tbl = jnp.asarray(door_emb, jnp.float32) @ w_row[65:73] + bias   # [4]

    # Batch tiling; tile is a multiple of 128 so the output block is lane-dense.
    tb = max(128, (int(tb) // 128) * 128)
    n_tiles = pl.cdiv(B, tb)
    b_pad = n_tiles * tb
    if b_pad != B:
        x = jnp.pad(x, ((0, b_pad - B), (0, 0)))

    out = pl.pallas_call(
        pretrain4_kernel,
        out_shape=jax.ShapeDtypeStruct((1, b_pad), jnp.float32),
        grid=(n_tiles,),
        in_specs=[
            pl.BlockSpec((tb, FEAT), lambda i: (i, 0)),             # x tile
            pl.BlockSpec((1, FEAT), lambda i: (0, 0)),              # w_eff (resident)
            pl.BlockSpec(memory_space=pltpu.MemorySpace.SMEM),      # door table [4]
        ],
        out_specs=pl.BlockSpec((1, tb), lambda i: (0, i)),
        compiler_params=pltpu.CompilerParams(
            dimension_semantics=("parallel",)),
    )(x, w_eff, tbl)

    return out[0, :B].reshape(B, 1)


def _reference(x, door_emb, w, b):
    """Pure-JAX reference mirroring the PyTorch forward."""
    pos, vol, dir_, door, car, up, dn = (
        x[:, 0:16], x[:, 16:17], x[:, 17:18], x[:, 18:19],
        x[:, 19:35], x[:, 35:51], x[:, 51:67])
    enc_door = door_emb[door[:, 0].astype(jnp.int32)]                     # [B, 8]
    feats = jnp.concatenate([pos, dir_, car, up, dn, enc_door], axis=-1)  # [B, 73]
    return feats @ w.T + b                                                # [B, 1]


if __name__ == "__main__":
    B = 200                   # small batch of elevators (exercises tiling + padding)
    floor_num = 16            # implied by the 16-wide pos/call vectors

    key = jax.random.PRNGKey(0)
    k1, k2, k3, k4, k5, k6, k7, k8 = jax.random.split(key, 8)

    # inputs: [pos(16) | vol(1) | dir(1) | door_state(1) | car(16) | up(16) | dn(16)]
    pos_vec = jax.random.uniform(k1, (B, floor_num), jnp.float32)
    vol     = jax.random.uniform(k2, (B, 1), jnp.float32)
    dir_    = jax.random.randint(k3, (B, 1), 0, 3).astype(jnp.float32)
    door    = jax.random.randint(k4, (B, 1), 0, 4).astype(jnp.float32)
    calls   = jax.random.bernoulli(k5, 0.3, (B, 3 * floor_num)).astype(jnp.float32)
    x = jnp.concatenate([pos_vec, vol, dir_, door, calls], axis=-1)
    assert x.shape == (B, FEAT)

    # deterministic synthetic parameters (shapes from the module __init__)
    door_emb = jax.random.normal(k6, (4, 8), jnp.float32)              # Embedding(4, 8)
    w        = jax.random.normal(k7, (1, HIDDEN), jnp.float32) * 0.1   # Linear(73, 1).weight
    b        = jax.random.normal(k8, (1,), jnp.float32) * 0.1          # Linear(73, 1).bias

    y = pretrain_model4(x, door_emb, w, b, tb=128)
    jax.block_until_ready(y)

    y_ref = _reference(x, door_emb, w, b)
    assert y.shape == (B, 1)
    assert jnp.allclose(y, y_ref, atol=1e-5, rtol=1e-5), (y, y_ref)
    print("KERNEL_OK")
</pallas_src>

<mosaic_0001>
module attributes {stable_mosaic.version = 11 : i64} {
  func.func @pretrain4_kernel(%arg0: i32, %arg1: memref<128x67xf32, #tpu.memory_space<vmem>>, %arg2: memref<1x67xf32, #tpu.memory_space<vmem>>, %arg3: memref<4xf32, #tpu.memory_space<smem>>, %arg4: memref<1x128xf32, #tpu.memory_space<vmem>>) attributes {dimension_semantics = [#tpu.dimension_semantics<parallel>], iteration_bounds = array<i64: 2>, scalar_prefetch = 0 : i64, scratch_operands = 0 : i64, tpu.core_type = #tpu.core_type<tc>, window_params = [{transform_indices = @transform_0, window_bounds = array<i64: 128, 67>}, {pipeline_mode = #tpu.pipeline_mode<synchronous>, transform_indices = @transform_1, window_bounds = array<i64: 1, 67>}, {transform_indices = @transform_2, window_bounds = array<i64: 4>}, {transform_indices = @transform_3, window_bounds = array<i64: 1, 128>}]} {
    %c0 = arith.constant 0 : index
    %c0_0 = arith.constant 0 : index
    %0 = vector.load %arg1[%c0, %c0_0] : memref<128x67xf32, #tpu.memory_space<vmem>>, vector<128x67xf32>
    %c0_1 = arith.constant 0 : index
    %c0_2 = arith.constant 0 : index
    %1 = vector.load %arg2[%c0_1, %c0_2] : memref<1x67xf32, #tpu.memory_space<vmem>>, vector<1x67xf32>
    %2 = vector.broadcast %1 : vector<1x67xf32> to vector<128x67xf32>
    %3 = arith.mulf %0, %2 : vector<128x67xf32>
    %cst = arith.constant dense<0.000000e+00> : vector<128xf32>
    %4 = vector.multi_reduction <add>, %3, %cst [1] : vector<128x67xf32> to vector<128xf32>
    %5 = vector.extract_strided_slice %0 {offsets = [0, 18], sizes = [128, 1], strides = [1, 1]} : vector<128x67xf32> to vector<128x1xf32>
    %6 = vector.shape_cast %5 : vector<128x1xf32> to vector<128xf32>
    %7 = arith.fptosi %6 : vector<128xf32> to vector<128xi32>
    %c0_3 = arith.constant 0 : index
    %8 = memref.load %arg3[%c0_3] : memref<4xf32, #tpu.memory_space<smem>>
    %c1 = arith.constant 1 : index
    %9 = memref.load %arg3[%c1] : memref<4xf32, #tpu.memory_space<smem>>
    %c2 = arith.constant 2 : index
    %10 = memref.load %arg3[%c2] : memref<4xf32, #tpu.memory_space<smem>>
    %c3 = arith.constant 3 : index
    %11 = memref.load %arg3[%c3] : memref<4xf32, #tpu.memory_space<smem>>
    %c0_i32 = arith.constant 0 : i32
    %12 = vector.broadcast %c0_i32 : i32 to vector<128xi32>
    %13 = arith.cmpi eq, %7, %12 : vector<128xi32>
    %c1_i32 = arith.constant 1 : i32
    %14 = vector.broadcast %c1_i32 : i32 to vector<128xi32>
    %15 = arith.cmpi eq, %7, %14 : vector<128xi32>
    %c2_i32 = arith.constant 2 : i32
    %16 = vector.broadcast %c2_i32 : i32 to vector<128xi32>
    %17 = arith.cmpi eq, %7, %16 : vector<128xi32>
    %18 = vector.broadcast %10 : f32 to vector<128xf32>
    %19 = vector.broadcast %11 : f32 to vector<128xf32>
    %20 = arith.select %17, %18, %19 : vector<128xi1>, vector<128xf32>
    %21 = vector.broadcast %9 : f32 to vector<128xf32>
    %22 = arith.select %15, %21, %20 : vector<128xi1>, vector<128xf32>
    %23 = vector.broadcast %8 : f32 to vector<128xf32>
    %24 = arith.select %13, %23, %22 : vector<128xi1>, vector<128xf32>
    %25 = arith.addf %4, %24 : vector<128xf32>
    %26 = vector.shape_cast %25 : vector<128xf32> to vector<1x128xf32>
    %c0_4 = arith.constant 0 : index
    %c0_5 = arith.constant 0 : index
    %27 = vector.load %arg4[%c0_4, %c0_5] : memref<1x128xf32, #tpu.memory_space<vmem>>, vector<1x128xf32>
    tpu.vector_store %arg4[%c0_4, %c0_5], %26 {strides = array<i32>} : memref<1x128xf32, #tpu.memory_space<vmem>>, vector<1x128xf32>,
    return
  }
  func.func @transform_0(%arg0: i32) -> (i32, i32) {
    %c0_i32 = arith.constant 0 : i32
    %c0_i32_0 = arith.constant 0 : i32
    return %arg0, %c0_i32 : i32, i32
  }
  func.func @transform_1(%arg0: i32) -> (i32, i32) {
    %c0_i32 = arith.constant 0 : i32
    %c0_i32_0 = arith.constant 0 : i32
    %c0_i32_1 = arith.constant 0 : i32
    return %c0_i32, %c0_i32_0 : i32, i32
  }
  func.func @transform_2(%arg0: i32) -> i32 {
    %c0_i32 = arith.constant 0 : i32
    %c0_i32_0 = arith.constant 0 : i32
    return %c0_i32 : i32
  }
  func.func @transform_3(%arg0: i32) -> (i32, i32) {
    %c0_i32 = arith.constant 0 : i32
    %c0_i32_0 = arith.constant 0 : i32
    return %c0_i32, %arg0 : i32, i32
  }
}

</mosaic_0001>

<llo_original>
// kernel: pretrain_model4.1
$region0: #{pretrain_model4.1}
  #allocation0 [shape = 'u32[]', space=smem, size = 0x4, offset = 0x4, fixed_abs, tag = 'smem constant byte address 0x4 - core index']
  #allocation1 [shape = 'u32[144,128]{1,0:T(1,128)}', space=vmem, size = 0x12000, scoped, tag = 'internal scratch']
  %s0 = inlined_call_operand.vmem [shape: f32[256,67], index: 0, kind: input, shape index: {}]
  %s1 = inlined_call_operand.vmem [shape: f32[1,67], index: 1, kind: input, shape index: {}]
  %s2 = inlined_call_operand.vmem [shape: f32[4], index: 2, kind: input, shape index: {}]
  %s3 = inlined_call_operand.vmem [shape: f32[1,256], index: 3, kind: output, shape index: {}]
  %s4 = sld [smem:[#allocation0]]
  $region49: #{pretrain_model4.1} parent=0
    _
  %s6 = ssub.s32 1, %s4
  %s7 = scalar_select 0, %s6, %s4
  $region1: #{pretrain_model4.1} parent=0
    #allocation2 [shape = 'u8[512]{0}', space=smem, size = 0x200, scoped, tag = 'input window, operand 2, single buffered']
    #allocation3 [shape = 's32[2]{0}', space=sflag, size = 0x8, scoped, tag = 'scoped memory for pretrain_model4.1']
    %8 = vsyncpa [#allocation3], 0
    loop: start=0, step=1, limit=4
    $region2: #{pretrain_model4.1} parent=1 // loop_pre_header
      _
    $region3: #{pretrain_model4.1} parent=1 // loop_header
      %s10 = sphi 0, %s14
      %p11 = scmp.ge.s32.totalorder %s10, 4
      %s20 = sphi 0, %s22
      %s23 = sphi 0, %s20
      %s24 = sphi 0, %s23
      %s40 = sphi 0, %s24
      %s44 = sphi 0, %s44
      %s46 = sphi 0, %s44
      %s47 = sphi 0, %s46
      %s61 = sphi 0, %s47
      %s65 = sphi 0, %s65
      %s67 = sphi 0, %s65
      %s68 = sphi 0, %s67
      %s82 = sphi 0, %s68
      %s88 = sphi 0, %s90
      %s91 = sphi 0, %s88
      %s92 = sphi 0, %s91
      %s108 = sphi 0, %s92
    $region4: #{pretrain_model4.1} parent=1 // loop_header_branch
      %13 = sbr.rel (%p11) target = $region8
    $region5: #{pretrain_model4.1} parent=1 // loop_body
      %s15 = ssub.s32 %s10, 1
      %s16 = ssub.s32 %s10, 2
      %s17 = sadd.s32 %s10, 1
      %s18 = ssub.s32 %s10, %s17
      %p19 = scmp.eq.s32.totalorder %s18, 0
      %s21 = sadd.s32 %s20, 1
      %s22 = scalar_select %p19, %s20, %s21
      %p25 = pneg %p19
      %p26 = scmp.eq.s32.totalorder %s10, 1
      %p27 = por %p25, %p26
      %p28 = scmp.ne.s32.totalorder %s20, %s23
      %p29 = scmp.eq.s32.totalorder %s10, 0
      %p30 = por %p28, %p29
      %p31 = scmp.ne.s32.totalorder %s20, %s23
      %p32 = scmp.eq.s32.totalorder %s15, 1
      %p33 = por %p31, %p32
      %p34 = scmp.ne.s32.totalorder %s23, %s24
      %p35 = scmp.eq.s32.totalorder %s15, 0
      %p36 = por %p34, %p35
      %p37 = scmp.ne.s32.totalorder %s23, %s24
      %p38 = scmp.eq.s32.totalorder %s16, 1
      %p39 = por %p37, %p38
      %p41 = scmp.ne.s32.totalorder %s24, %s40
      %p42 = scmp.eq.s32.totalorder %s16, 0
      %p43 = por %p41, %p42
      %s45 = sadd.s32 %s44, 1
      %p48 = scmp.eq.s32.totalorder %s10, 1
      %p49 = scmp.ne.s32.totalorder %s44, %s46
      %p50 = scmp.eq.s32.totalorder %s10, 0
      %p51 = por %p49, %p50
      %p52 = scmp.ne.s32.totalorder %s44, %s46
      %p53 = scmp.eq.s32.totalorder %s15, 1
      %p54 = por %p52, %p53
      %p55 = scmp.ne.s32.totalorder %s46, %s47
      %p56 = scmp.eq.s32.totalorder %s15, 0
      %p57 = por %p55, %p56
      %p58 = scmp.ne.s32.totalorder %s46, %s47
      %p59 = scmp.eq.s32.totalorder %s16, 1
      %p60 = por %p58, %p59
      %p62 = scmp.ne.s32.totalorder %s47, %s61
      %p63 = scmp.eq.s32.totalorder %s16, 0
      %p64 = por %p62, %p63
      %s66 = sadd.s32 %s65, 1
      %p69 = scmp.eq.s32.totalorder %s10, 1
      %p70 = scmp.ne.s32.totalorder %s65, %s67
      %p71 = scmp.eq.s32.totalorder %s10, 0
      %p72 = por %p70, %p71
      %p73 = scmp.ne.s32.totalorder %s65, %s67
      %p74 = scmp.eq.s32.totalorder %s15, 1
      %p75 = por %p73, %p74
      %p76 = scmp.ne.s32.totalorder %s67, %s68
      %p77 = scmp.eq.s32.totalorder %s15, 0
      %p78 = por %p76, %p77
      %p79 = scmp.ne.s32.totalorder %s67, %s68
      %p80 = scmp.eq.s32.totalorder %s16, 1
      %p81 = por %p79, %p80
      %p83 = scmp.ne.s32.totalorder %s68, %s82
      %p84 = scmp.eq.s32.totalorder %s16, 0
      %p85 = por %p83, %p84
      %s86 = ssub.s32 %s10, %s17
      %p87 = scmp.eq.s32.totalorder %s86, 0
      %s89 = sadd.s32 %s88, 1
      %s90 = scalar_select %p87, %s88, %s89
      %p93 = pneg %p87
      %p94 = scmp.eq.s32.totalorder %s10, 1
      %p95 = por %p93, %p94
      %p96 = scmp.ne.s32.totalorder %s88, %s91
      %p97 = scmp.eq.s32.totalorder %s10, 0
      %p98 = por %p96, %p97
      %p99 = scmp.ne.s32.totalorder %s88, %s91
      %p100 = scmp.eq.s32.totalorder %s15, 1
      %p101 = por %p99, %p100
      %p102 = scmp.ne.s32.totalorder %s91, %s92
      %p103 = scmp.eq.s32.totalorder %s15, 0
      %p104 = por %p102, %p103
      %p105 = scmp.ne.s32.totalorder %s91, %s92
      %p106 = scmp.eq.s32.totalorder %s16, 1
      %p107 = por %p105, %p106
      %p109 = scmp.ne.s32.totalorder %s92, %s108
      %p110 = scmp.eq.s32.totalorder %s16, 0
      %p111 = por %p109, %p110
      %p112 = scmp.le.s32.totalorder 1, %s10
      %p113 = scmp.lt.s32.totalorder %s10, 3
      %p114 = pnand %p112, %p113
      %p115 = pneg %p114
      // Predicated region
      $region9: #{pretrain_model4.1} parent=5 // pred_check
        _
      $region10: #{pretrain_model4.1} parent=5 // pred_check_branch
        %117 = sbr.rel (%p114) target = $region12
      $region11: #{pretrain_model4.1} parent=5 // pred_region
        %s118 = ssub.s32 %s10, 1
        // Predicated region
        $region13: #{pretrain_model4.1} parent=11 // pred_check
          %p119 = pneg %p57
        $region14: #{pretrain_model4.1} parent=11 // pred_check_branch
          %121 = sbr.rel (%p119) target = $region16
        $region15: #{pretrain_model4.1} parent=11 // pred_region
          _
        $region16: #{pretrain_model4.1} parent=11 // pred_fallthru
          _
        // Predicated region
        $region17: #{pretrain_model4.1} parent=11 // pred_check
          %p122 = pneg %p78
        $region18: #{pretrain_model4.1} parent=11 // pred_check_branch
          %124 = sbr.rel (%p122) target = $region20
        $region19: #{pretrain_model4.1} parent=11 // pred_region
          %s126 = ssub.s32 16, 16
          %127 = vsyncadd [#allocation3], %s126
          %s129 = sshll.u32 %s2, 4
          %s130 = int_to_ptr.vmem [resolvable:$true] %s129
          %132 = dma.vmem_to_smem %s130, 16, [#allocation2], [#allocation3]
        $region20: #{pretrain_model4.1} parent=11 // pred_fallthru
          _
      $region12: #{pretrain_model4.1} parent=5 // pred_fallthru
        _
      %p133 = scmp.lt.s32.totalorder %s10, 2
      // Predicated region
      $region21: #{pretrain_model4.1} parent=5 // pred_check
        %p134 = pneg %p133
      $region22: #{pretrain_model4.1} parent=5 // pred_check_branch
        %136 = sbr.rel (%p134) target = $region24
      $region23: #{pretrain_model4.1} parent=5 // pred_region
        // Predicated region
        $region25: #{pretrain_model4.1} parent=23 // pred_check
          %p137 = pneg %p30
        $region26: #{pretrain_model4.1} parent=23 // pred_check_branch
          %139 = sbr.rel (%p137) target = $region28
        $region27: #{pretrain_model4.1} parent=23 // pred_region
          %s140 = smul.u32 16, %s10
          %p141 = scmp.lt.s32.totalorder %s140, 31
          %s142 = scalar_select %p141, %s140, 31
          %s143 = smul.addr %s142, 8
          %s144 = scalar_lea.vmem %s0, %s143
          %s145 = smul.u32 16, %s10
        $region28: #{pretrain_model4.1} parent=23 // pred_fallthru
          _
      $region24: #{pretrain_model4.1} parent=5 // pred_fallthru
        _
      %p146 = scmp.le.s32.totalorder 1, %s10
      %p147 = scmp.lt.s32.totalorder %s10, 3
      %p148 = pnand %p146, %p147
      %p149 = pneg %p148
      // Predicated region
      $region29: #{pretrain_model4.1} parent=5 // pred_check
        _
      $region30: #{pretrain_model4.1} parent=5 // pred_check_branch
        %151 = sbr.rel (%p148) target = $region32
      $region31: #{pretrain_model4.1} parent=5 // pred_region
        %s152 = ssub.s32 %s10, 1
        // Predicated region
        $region33: #{pretrain_model4.1} parent=31 // pred_check
          %p153 = pneg %p78
        $region34: #{pretrain_model4.1} parent=31 // pred_check_branch
          %155 = sbr.rel (%p153) target = $region36
        $region35: #{pretrain_model4.1} parent=31 // pred_region
          %156 = dma.done [#allocation3], 16
        $region36: #{pretrain_model4.1} parent=31 // pred_fallthru
          _
        %157 = sfence
        %s158 = smul.u32 16, %s15
        %p159 = scmp.lt.s32.totalorder %s158, 31
        %s160 = scalar_select %p159, %s158, 31
        %s161 = smul.addr %s160, 8
        %s162 = scalar_lea.vmem %s0, %s161
        %p163 = pneg %p36
        %p164 = pneg %p33
        %p165 = pneg %p57
        %p166 = pneg %p54
        %p167 = pneg %p78
        %p168 = pneg %p75
        %p169 = pneg %p104
        %p170 = pneg %p101
        %p171 = scmp.lt.s32.totalorder %s15, 1
        %s172 = scalar_select %p171, %s15, 1
        %s173 = scalar_lea.vmem %s3, %s172
        %s174 = smul.u32 16, %s15
        %p175 = scmp.lt.s32.totalorder %s174, 31
        %s176 = scalar_select %p175, %s174, 31
        %s177 = smul.addr %s176, 8
        %s178 = scalar_lea.vmem %s0, %s177
        %s179 = smul.u32 16, %s15
        %p180 = scmp.lt.s32.totalorder %s15, 1
        %s181 = scalar_select %p180, %s15, 1
        %s182 = scalar_lea.vmem %s3, %s181
        %v183 = vld [vmem:[%s178] sm:$0xff]
        %v184 = vld [vmem:[%s178 + $0x8] sm:$0xff]
        %v185 = vld [vmem:[%s178 + $0x10] sm:$0xff]
        %v186 = vld [vmem:[%s178 + $0x18] sm:$0xff]
        %v187 = vld [vmem:[%s178 + $0x20] sm:$0xff]
        %v188 = vld [vmem:[%s178 + $0x28] sm:$0xff]
        %v189 = vld [vmem:[%s178 + $0x30] sm:$0xff]
        %v190 = vld [vmem:[%s178 + $0x38] sm:$0xff]
        %v191 = vld [vmem:[%s178 + $0x40] sm:$0xff]
        %v192 = vld [vmem:[%s178 + $0x48] sm:$0xff]
        %v193 = vld [vmem:[%s178 + $0x50] sm:$0xff]
        %v194 = vld [vmem:[%s178 + $0x58] sm:$0xff]
        %v195 = vld [vmem:[%s178 + $0x60] sm:$0xff]
        %v196 = vld [vmem:[%s178 + $0x68] sm:$0xff]
        %v197 = vld [vmem:[%s178 + $0x70] sm:$0xff]
        %v198 = vld [vmem:[%s178 + $0x78] sm:$0xff]
        %v199 = vld [vmem:[%s1] sm:$0x1]
        %v201 = vlaneseq
        %v202 = vshrl.u32 %v201, 7
        %v203 = vsub.s32 0, %v202
        %v204 = vrot.slane %v199, %v203
        %v206 = vmul.f32 %v183, %v204
        %v207 = vmul.f32 %v184, %v204
        %v208 = vmul.f32 %v185, %v204
        %v209 = vmul.f32 %v186, %v204
        %v210 = vmul.f32 %v187, %v204
        %v211 = vmul.f32 %v188, %v204
        %v212 = vmul.f32 %v189, %v204
        %v213 = vmul.f32 %v190, %v204
        %v214 = vmul.f32 %v191, %v204
        %v215 = vmul.f32 %v192, %v204
        %v216 = vmul.f32 %v193, %v204
        %v217 = vmul.f32 %v194, %v204
        %v218 = vmul.f32 %v195, %v204
        %v219 = vmul.f32 %v196, %v204
        %v220 = vmul.f32 %v197, %v204
        %v221 = vmul.f32 %v198, %v204
        %vm222 = vcmask 547840
        %v223 = vsel %vm222, %v206, 0.0
        %224 = vadd.xlane.f32.xlu0 %v223
        %v225 = vpop.xlane.xlu0 %224
        %v226 = vsel %vm222, %v207, 0.0
        %227 = vadd.xlane.f32.xlu0 %v226
        %v228 = vpop.xlane.xlu0 %227
        %v229 = vsel %vm222, %v208, 0.0
        %230 = vadd.xlane.f32.xlu0 %v229
        %v231 = vpop.xlane.xlu0 %230
        %v232 = vsel %vm222, %v209, 0.0
        %233 = vadd.xlane.f32.xlu0 %v232
        %v234 = vpop.xlane.xlu0 %233
        %v235 = vsel %vm222, %v210, 0.0
        %236 = vadd.xlane.f32.xlu0 %v235
        %v237 = vpop.xlane.xlu0 %236
        %v238 = vsel %vm222, %v211, 0.0
        %239 = vadd.xlane.f32.xlu0 %v238
        %v240 = vpop.xlane.xlu0 %239
        %v241 = vsel %vm222, %v212, 0.0
        %242 = vadd.xlane.f32.xlu0 %v241
        %v243 = vpop.xlane.xlu0 %242
        %v244 = vsel %vm222, %v213, 0.0
        %245 = vadd.xlane.f32.xlu0 %v244
        %v246 = vpop.xlane.xlu0 %245
        %v247 = vsel %vm222, %v214, 0.0
        %248 = vadd.xlane.f32.xlu0 %v247
        %v249 = vpop.xlane.xlu0 %248
        %v250 = vsel %vm222, %v215, 0.0
        %251 = vadd.xlane.f32.xlu0 %v250
        %v252 = vpop.xlane.xlu0 %251
        %v253 = vsel %vm222, %v216, 0.0
        %254 = vadd.xlane.f32.xlu0 %v253
        %v255 = vpop.xlane.xlu0 %254
        %v256 = vsel %vm222, %v217, 0.0
        %257 = vadd.xlane.f32.xlu0 %v256
        %v258 = vpop.xlane.xlu0 %257
        %v259 = vsel %vm222, %v218, 0.0
        %260 = vadd.xlane.f32.xlu0 %v259
        %v261 = vpop.xlane.xlu0 %260
        %v262 = vsel %vm222, %v219, 0.0
        %263 = vadd.xlane.f32.xlu0 %v262
        %v264 = vpop.xlane.xlu0 %263
        %v265 = vsel %vm222, %v220, 0.0
        %266 = vadd.xlane.f32.xlu0 %v265
        %v267 = vpop.xlane.xlu0 %266
        %v268 = vsel %vm222, %v221, 0.0
        %269 = vadd.xlane.f32.xlu0 %v268
        %v270 = vpop.xlane.xlu0 %269
        %v271 = vcvt.f32.s32.to.zero.pseudo %v183
        %v272 = vcvt.f32.s32.to.zero.pseudo %v184
        %v273 = vcvt.f32.s32.to.zero.pseudo %v185
        %v274 = vcvt.f32.s32.to.zero.pseudo %v186
        %v275 = vcvt.f32.s32.to.zero.pseudo %v187
        %v276 = vcvt.f32.s32.to.zero.pseudo %v188
        %v277 = vcvt.f32.s32.to.zero.pseudo %v189
        %v278 = vcvt.f32.s32.to.zero.pseudo %v190
        %v279 = vcvt.f32.s32.to.zero.pseudo %v191
        %v280 = vcvt.f32.s32.to.zero.pseudo %v192
        %v281 = vcvt.f32.s32.to.zero.pseudo %v193
        %v282 = vcvt.f32.s32.to.zero.pseudo %v194
        %v283 = vcvt.f32.s32.to.zero.pseudo %v195
        %v284 = vcvt.f32.s32.to.zero.pseudo %v196
        %v285 = vcvt.f32.s32.to.zero.pseudo %v197
        %v286 = vcvt.f32.s32.to.zero.pseudo %v198
        %s287 = sld [smem:[#allocation2]]
        %s288 = sld [smem:[#allocation2 + $0x1]]
        %s289 = sld [smem:[#allocation2 + $0x2]]
        %s290 = sld [smem:[#allocation2 + $0x3]]
        %vm291 = vcmp.eq.s32.totalorder %v271, 0
        %vm292 = vcmp.eq.s32.totalorder %v272, 0
        %vm293 = vcmp.eq.s32.totalorder %v273, 0
        %vm294 = vcmp.eq.s32.totalorder %v274, 0
        %vm295 = vcmp.eq.s32.totalorder %v275, 0
        %vm296 = vcmp.eq.s32.totalorder %v276, 0
        %vm297 = vcmp.eq.s32.totalorder %v277, 0
        %vm298 = vcmp.eq.s32.totalorder %v278, 0
        %vm299 = vcmp.eq.s32.totalorder %v279, 0
        %vm300 = vcmp.eq.s32.totalorder %v280, 0
        %vm301 = vcmp.eq.s32.totalorder %v281, 0
        %vm302 = vcmp.eq.s32.totalorder %v282, 0
        %vm303 = vcmp.eq.s32.totalorder %v283, 0
        %vm304 = vcmp.eq.s32.totalorder %v284, 0
        %vm305 = vcmp.eq.s32.totalorder %v285, 0
        %vm306 = vcmp.eq.s32.totalorder %v286, 0
        %vm307 = vcmp.eq.s32.totalorder %v271, 1
        %vm308 = vcmp.eq.s32.totalorder %v272, 1
        %vm309 = vcmp.eq.s32.totalorder %v273, 1
        %vm310 = vcmp.eq.s32.totalorder %v274, 1
        %vm311 = vcmp.eq.s32.totalorder %v275, 1
        %vm312 = vcmp.eq.s32.totalorder %v276, 1
        %vm313 = vcmp.eq.s32.totalorder %v277, 1
        %vm314 = vcmp.eq.s32.totalorder %v278, 1
        %vm315 = vcmp.eq.s32.totalorder %v279, 1
        %vm316 = vcmp.eq.s32.totalorder %v280, 1
        %vm317 = vcmp.eq.s32.totalorder %v281, 1
        %vm318 = vcmp.eq.s32.totalorder %v282, 1
        %vm319 = vcmp.eq.s32.totalorder %v283, 1
        %vm320 = vcmp.eq.s32.totalorder %v284, 1
        %vm321 = vcmp.eq.s32.totalorder %v285, 1
        %vm322 = vcmp.eq.s32.totalorder %v286, 1
        %vm323 = vcmp.eq.s32.totalorder %v271, 2
        %vm324 = vcmp.eq.s32.totalorder %v272, 2
        %vm325 = vcmp.eq.s32.totalorder %v273, 2
        %vm326 = vcmp.eq.s32.totalorder %v274, 2
        %vm327 = vcmp.eq.s32.totalorder %v275, 2
        %vm328 = vcmp.eq.s32.totalorder %v276, 2
        %vm329 = vcmp.eq.s32.totalorder %v277, 2
        %vm330 = vcmp.eq.s32.totalorder %v278, 2
        %vm331 = vcmp.eq.s32.totalorder %v279, 2
        %vm332 = vcmp.eq.s32.totalorder %v280, 2
        %vm333 = vcmp.eq.s32.totalorder %v281, 2
        %vm334 = vcmp.eq.s32.totalorder %v282, 2
        %vm335 = vcmp.eq.s32.totalorder %v283, 2
        %vm336 = vcmp.eq.s32.totalorder %v284, 2
        %vm337 = vcmp.eq.s32.totalorder %v285, 2
        %vm338 = vcmp.eq.s32.totalorder %v286, 2
        %v339 = vstv %s289
        %v340 = vstv %s290
        %v341 = vsel %vm323, %v339, %v340
        %v342 = vsel %vm324, %v339, %v340
        %v343 = vsel %vm325, %v339, %v340
        %v344 = vsel %vm326, %v339, %v340
        %v345 = vsel %vm327, %v339, %v340
        %v346 = vsel %vm328, %v339, %v340
        %v347 = vsel %vm329, %v339, %v340
        %v348 = vsel %vm330, %v339, %v340
        %v349 = vsel %vm331, %v339, %v340
        %v350 = vsel %vm332, %v339, %v340
        %v351 = vsel %vm333, %v339, %v340
        %v352 = vsel %vm334, %v339, %v340
        %v353 = vsel %vm335, %v339, %v340
        %v354 = vsel %vm336, %v339, %v340
        %v355 = vsel %vm337, %v339, %v340
        %v356 = vsel %vm338, %v339, %v340
        %v357 = vstv %s288
        %v358 = vsel %vm307, %v357, %v341
        %v359 = vsel %vm308, %v357, %v342
        %v360 = vsel %vm309, %v357, %v343
        %v361 = vsel %vm310, %v357, %v344
        %v362 = vsel %vm311, %v357, %v345
        %v363 = vsel %vm312, %v357, %v346
        %v364 = vsel %vm313, %v357, %v347
        %v365 = vsel %vm314, %v357, %v348
        %v366 = vsel %vm315, %v357, %v349
        %v367 = vsel %vm316, %v357, %v350
        %v368 = vsel %vm317, %v357, %v351
        %v369 = vsel %vm318, %v357, %v352
        %v370 = vsel %vm319, %v357, %v353
        %v371 = vsel %vm320, %v357, %v354
        %v372 = vsel %vm321, %v357, %v355
        %v373 = vsel %vm322, %v357, %v356
        %v374 = vstv %s287
        %v375 = vsel %vm291, %v374, %v358
        %v376 = vsel %vm292, %v374, %v359
        %v377 = vsel %vm293, %v374, %v360
        %v378 = vsel %vm294, %v374, %v361
        %v379 = vsel %vm295, %v374, %v362
        %v380 = vsel %vm296, %v374, %v363
        %v381 = vsel %vm297, %v374, %v364
        %v382 = vsel %vm298, %v374, %v365
        %v383 = vsel %vm299, %v374, %v366
        %v384 = vsel %vm300, %v374, %v367
        %v385 = vsel %vm301, %v374, %v368
        %v386 = vsel %vm302, %v374, %v369
        %v387 = vsel %vm303, %v374, %v370
        %v388 = vsel %vm304, %v374, %v371
        %v389 = vsel %vm305, %v374, %v372
        %v390 = vsel %vm306, %v374, %v373
        %v391 = vadd.f32 %v225, %v375
        %v392 = vadd.f32 %v228, %v376
        %v393 = vadd.f32 %v231, %v377
        %v394 = vadd.f32 %v234, %v378
        %v395 = vadd.f32 %v237, %v379
        %v396 = vadd.f32 %v240, %v380
        %v397 = vadd.f32 %v243, %v381
        %v398 = vadd.f32 %v246, %v382
        %v399 = vadd.f32 %v249, %v383
        %v400 = vadd.f32 %v252, %v384
        %v401 = vadd.f32 %v255, %v385
        %v402 = vadd.f32 %v258, %v386
        %v403 = vadd.f32 %v261, %v387
        %v404 = vadd.f32 %v264, %v388
        %v405 = vadd.f32 %v267, %v389
        %v406 = vadd.f32 %v270, %v390
        %423 = vset.pattern.permute.xlu0 18
        %424 = vperm.xlu0 %423, %v391
        %v425 = vpop.permute.xlu0 %424
        %426 = vset.pattern.permute.xlu0 18
        %427 = vperm.xlu0 %426, %v392
        %v428 = vpop.permute.xlu0 %427
        %429 = vset.pattern.permute.xlu0 18
        %430 = vperm.xlu0 %429, %v393
        %v431 = vpop.permute.xlu0 %430
        %432 = vset.pattern.permute.xlu0 18
        %433 = vperm.xlu0 %432, %v394
        %v434 = vpop.permute.xlu0 %433
        %435 = vset.pattern.permute.xlu0 18
        %436 = vperm.xlu0 %435, %v395
        %v437 = vpop.permute.xlu0 %436
        %438 = vset.pattern.permute.xlu0 18
        %439 = vperm.xlu0 %438, %v396
        %v440 = vpop.permute.xlu0 %439
        %441 = vset.pattern.permute.xlu0 18
        %442 = vperm.xlu0 %441, %v397
        %v443 = vpop.permute.xlu0 %442
        %444 = vset.pattern.permute.xlu0 18
        %445 = vperm.xlu0 %444, %v398
        %v446 = vpop.permute.xlu0 %445
        %447 = vset.pattern.permute.xlu0 18
        %448 = vperm.xlu0 %447, %v399
        %v449 = vpop.permute.xlu0 %448
        %450 = vset.pattern.permute.xlu0 18
        %451 = vperm.xlu0 %450, %v400
        %v452 = vpop.permute.xlu0 %451
        %453 = vset.pattern.permute.xlu0 18
        %454 = vperm.xlu0 %453, %v401
        %v455 = vpop.permute.xlu0 %454
        %456 = vset.pattern.permute.xlu0 18
        %457 = vperm.xlu0 %456, %v402
        %v458 = vpop.permute.xlu0 %457
        %459 = vset.pattern.permute.xlu0 18
        %460 = vperm.xlu0 %459, %v403
        %v461 = vpop.permute.xlu0 %460
        %462 = vset.pattern.permute.xlu0 18
        %463 = vperm.xlu0 %462, %v404
        %v464 = vpop.permute.xlu0 %463
        %465 = vset.pattern.permute.xlu0 18
        %466 = vperm.xlu0 %465, %v405
        %v467 = vpop.permute.xlu0 %466
        %468 = vset.pattern.permute.xlu0 18
        %469 = vperm.xlu0 %468, %v406
        %v470 = vpop.permute.xlu0 %469
        %v471 = vlaneseq
        %v472 = vand.u32 %v471, 127
        %v473 = vlaneseq
        %v474 = vshrl.u32 %v473, 7
        %v475 = vsub.s32 %v472, %v474
        %v476 = vrot.slane %v425, %v475
        %v477 = vadd.s32 %v472, 4294967288
        %v478 = vlaneseq
        %v479 = vshrl.u32 %v478, 7
        %v480 = vsub.s32 %v477, %v479
        %v481 = vrot.slane %v428, %v480
        %vm482 = vcmask 130112
        %v483 = vsel %vm482, %v481, %v476
        %v484 = vadd.s32 %v472, 4294967280
        %v485 = vlaneseq
        %v486 = vshrl.u32 %v485, 7
        %v487 = vsub.s32 %v484, %v486
        %v488 = vrot.slane %v431, %v487
        %vm489 = vcmask 195712
        %v490 = vsel %vm489, %v488, %v483
        %v491 = vadd.s32 %v472, 4294967272
        %v492 = vlaneseq
        %v493 = vshrl.u32 %v492, 7
        %v494 = vsub.s32 %v491, %v493
        %v495 = vrot.slane %v434, %v494
        %vm496 = vcmask 261312
        %v497 = vsel %vm496, %v495, %v490
        %v498 = vadd.s32 %v472, 4294967264
        %v499 = vlaneseq
        %v500 = vshrl.u32 %v499, 7
        %v501 = vsub.s32 %v498, %v500
        %v502 = vrot.slane %v437, %v501
        %vm503 = vcmask 326912
        %v504 = vsel %vm503, %v502, %v497
        %v505 = vadd.s32 %v472, 4294967256
        %v506 = vlaneseq
        %v507 = vshrl.u32 %v506, 7
        %v508 = vsub.s32 %v505, %v507
        %v509 = vrot.slane %v440, %v508
        %vm510 = vcmask 392512
        %v511 = vsel %vm510, %v509, %v504
        %v512 = vadd.s32 %v472, 4294967248
        %v513 = vlaneseq
        %v514 = vshrl.u32 %v513, 7
        %v515 = vsub.s32 %v512, %v514
        %v516 = vrot.slane %v443, %v515
        %vm517 = vcmask 458112
        %v518 = vsel %vm517, %v516, %v511
        %v519 = vadd.s32 %v472, 4294967240
        %v520 = vlaneseq
        %v521 = vshrl.u32 %v520, 7
        %v522 = vsub.s32 %v519, %v521
        %v523 = vrot.slane %v446, %v522
        %vm524 = vcmask 523712
        %v525 = vsel %vm524, %v523, %v518
        %v526 = vadd.s32 %v472, 4294967232
        %v527 = vlaneseq
        %v528 = vshrl.u32 %v527, 7
        %v529 = vsub.s32 %v526, %v528
        %v530 = vrot.slane %v449, %v529
        %vm531 = vcmask 589312
        %v532 = vsel %vm531, %v530, %v525
        %v533 = vadd.s32 %v472, 4294967224
        %v534 = vlaneseq
        %v535 = vshrl.u32 %v534, 7
        %v536 = vsub.s32 %v533, %v535
        %v537 = vrot.slane %v452, %v536
        %vm538 = vcmask 654912
        %v539 = vsel %vm538, %v537, %v532
        %v540 = vadd.s32 %v472, 4294967216
        %v541 = vlaneseq
        %v542 = vshrl.u32 %v541, 7
        %v543 = vsub.s32 %v540, %v542
        %v544 = vrot.slane %v455, %v543
        %vm545 = vcmask 720512
        %v546 = vsel %vm545, %v544, %v539
        %v547 = vadd.s32 %v472, 4294967208
        %v548 = vlaneseq
        %v549 = vshrl.u32 %v548, 7
        %v550 = vsub.s32 %v547, %v549
        %v551 = vrot.slane %v458, %v550
        %vm552 = vcmask 786112
        %v553 = vsel %vm552, %v551, %v546
        %v554 = vadd.s32 %v472, 4294967200
        %v555 = vlaneseq
        %v556 = vshrl.u32 %v555, 7
        %v557 = vsub.s32 %v554, %v556
        %v558 = vrot.slane %v461, %v557
        %vm559 = vcmask 851712
        %v560 = vsel %vm559, %v558, %v553
        %v561 = vadd.s32 %v472, 4294967192
        %v562 = vlaneseq
        %v563 = vshrl.u32 %v562, 7
        %v564 = vsub.s32 %v561, %v563
        %v565 = vrot.slane %v464, %v564
        %vm566 = vcmask 917312
        %v567 = vsel %vm566, %v565, %v560
        %v568 = vadd.s32 %v472, 4294967184
        %v569 = vlaneseq
        %v570 = vshrl.u32 %v569, 7
        %v571 = vsub.s32 %v568, %v570
        %v572 = vrot.slane %v467, %v571
        %vm573 = vcmask 982912
        %v574 = vsel %vm573, %v572, %v567
        %v575 = vadd.s32 %v472, 4294967176
        %v576 = vlaneseq
        %v577 = vshrl.u32 %v576, 7
        %v578 = vsub.s32 %v575, %v577
        %v579 = vrot.slane %v470, %v578
        %vm580 = vcmask 1048512
        %v581 = vsel %vm580, %v579, %v574
        %583 = vst [vmem:[%s182] sm:$0x1] %v581
        %p584 = scmp.lt.s32.totalorder %s15, 1
        %s585 = scalar_select %p584, %s15, 1
        %s586 = scalar_lea.vmem %s3, %s585
        // Predicated region
        $region37: #{pretrain_model4.1} parent=31 // pred_check
          %p587 = pneg %p101
        $region38: #{pretrain_model4.1} parent=31 // pred_check_branch
          %589 = sbr.rel (%p587) target = $region40
        $region39: #{pretrain_model4.1} parent=31 // pred_region
          _
        $region40: #{pretrain_model4.1} parent=31 // pred_fallthru
          _
      $region32: #{pretrain_model4.1} parent=5 // pred_fallthru
        _
      %p590 = scmp.le.s32.totalorder 2, %s10
      // Predicated region
      $region41: #{pretrain_model4.1} parent=5 // pred_check
        %p591 = pneg %p590
      $region42: #{pretrain_model4.1} parent=5 // pred_check_branch
        %593 = sbr.rel (%p591) target = $region44
      $region43: #{pretrain_model4.1} parent=5 // pred_region
        %s594 = ssub.s32 %s10, 2
        // Predicated region
        $region45: #{pretrain_model4.1} parent=43 // pred_check
          %p595 = pneg %p107
        $region46: #{pretrain_model4.1} parent=43 // pred_check_branch
          %597 = sbr.rel (%p595) target = $region48
        $region47: #{pretrain_model4.1} parent=43 // pred_region
          %p598 = scmp.lt.s32.totalorder %s16, 1
          %s599 = scalar_select %p598, %s16, 1
          %s600 = scalar_lea.vmem %s3, %s599
        $region48: #{pretrain_model4.1} parent=43 // pred_fallthru
          _
      $region44: #{pretrain_model4.1} parent=5 // pred_fallthru
        _
    $region6: #{pretrain_model4.1} parent=1 // loop_footer
      %s14 = sadd.s32 1, %s10
    $region7: #{pretrain_model4.1} parent=1 // loop_footer_branch
      %9 = sbr.rel target = $region3
    $region8: #{pretrain_model4.1} parent=1 // loop_exit
      _
    %601 = vsyncpa [#allocation3], 1
    %s602 = scalar_lea.sflag [#allocation3], 1
    %603 = vsyncpa %s602, 1

</llo_original>
